<compile_context>
chip_gen: v7x
topology: tpu7x:2x2x1
jax: 0.10.0
libtpu: 0.0.40
codegen_flags: <defaults>
</compile_context>

<pallas_src>
import math

import jax
import jax.numpy as jnp
from jax.experimental import pallas as pl
from jax.experimental.pallas import tpu as pltpu


def _round_up(x, m):
    return (x + m - 1) // m * m


def _pick_chunk(T, Bp, Kp, Op, *, target_rows=256, vmem_budget=24 * 1024 * 1024):
    """Pick a timestep chunk so CHUNK*Bp feeds the MXU ~target_rows LHS rows while the
    double-buffered chunk buffers fit a v7x-safe VMEM budget."""
    chunk = max(1, min(T, target_rows // Bp))

    def vmem_bytes(c):
        x_buf = 2 * c * Bp * Kp * 2            # double-buffered bf16 x chunk
        out_buf = 2 * c * Bp * Op * (4 + 2)    # double-buffered f32 mem + bf16 spike
        w_buf = Kp * Op * 2                    # resident bf16 weight
        params = 8 * Op * 4                    # packed parameter rows
        state = 4 * Bp * Op * 4                # mem0/spike0 inputs + carry scratch
        return x_buf + out_buf + w_buf + params + state

    while chunk > 1 and vmem_bytes(chunk) > vmem_budget:
        chunk //= 2
    return chunk


def _snn_dense_chunk_kernel(x_ref, w_ref, p_ref, mem0_ref, spike0_ref,
                            mem_out_ref, spike_out_ref,
                            mem_sc, spike_sc):
    c = pl.program_id(0)
    Bp, Op = mem_sc.shape
    rows = x_ref.shape[0]
    chunk = rows // Bp

    # Load initial neuron state into the VMEM carry on the first chunk.
    @pl.when(c == 0)
    def _():
        mem_sc[...] = mem0_ref[...]
        spike_sc[...] = spike0_ref[...]

    # Packed parameter rows: [alpha, (1-alpha)*bias, vth, vth*dt, 0...]
    # Broadcasts hoisted out of the per-step loop (no per-iteration broadcast_in_dim).
    alpha = jnp.broadcast_to(p_ref[0:1, :], (Bp, Op))
    b_eff = p_ref[1:2, :]
    vth = jnp.broadcast_to(p_ref[2:3, :], (Bp, Op))
    vthdt = jnp.broadcast_to(p_ref[3:4, :], (Bp, Op))

    # State-independent Linear hoisted over the whole chunk: one wide MXU matmul with
    # M = chunk*Bp rows (bf16 operands, f32 accumulate). (1 - alpha) and the bias are
    # pre-folded in the wrapper, so d_all == (1 - alpha) * (x @ W^T + b).
    d_all = jnp.dot(x_ref[...], w_ref[...],
                    preferred_element_type=jnp.float32) + b_eff

    # Elementwise recurrence over the chunk (fully unrolled; static 8-sublane-aligned
    # slices of d_all are layout-free).
    mem = mem_sc[...]
    spike = spike_sc[...]
    for s in range(chunk):
        d_s = d_all[s * Bp:(s + 1) * Bp, :]
        mem = mem * alpha + d_s - vthdt * spike
        spike = (mem - vth > 0.0).astype(jnp.float32)
        mem_out_ref[s * Bp:(s + 1) * Bp, :] = mem
        spike_out_ref[s * Bp:(s + 1) * Bp, :] = spike.astype(spike_out_ref.dtype)

    # Carry state to the next chunk.
    mem_sc[...] = mem
    spike_sc[...] = spike


def spike_dense_forward_seq(input_spikes, weight_t, bias, mem0, spike0, vth,
                            tau_m, *, dt=4.0):
    """Run T fused timesteps of spike_dense_test_origin.forward.

    input_spikes: [T, B, input_dim]
    weight_t:     [input_dim, output_dim]  (torch weight transposed)
    bias:         [output_dim]
    mem0, spike0: [B, output_dim]  initial neuron state
    vth:          scalar threshold (module stores vth*ones([B, O]))
    tau_m:        [output_dim]
    Returns (mem_seq, spike_seq), each [T, B, output_dim] float32.
    """
    T, B, K = input_spikes.shape
    O = weight_t.shape[1]

    Bp = _round_up(max(B, 8), 8)
    Kp = _round_up(max(K, 128), 128)   # lane alignment only; don't over-pad K
    Op = _round_up(max(O, 128), 128)

    chunk = _pick_chunk(T, Bp, Kp, Op)
    n_chunks = pl.cdiv(T, chunk)
    Tp = n_chunks * chunk
    rows = chunk * Bp

    alpha = jax.nn.sigmoid(tau_m.astype(jnp.float32))        # hoisted (parameter)
    one_m_alpha = 1.0 - alpha
    # Fold (1 - alpha) into the Linear (R_m = 1) BEFORE the bf16 round.
    w_eff = weight_t.astype(jnp.float32) * one_m_alpha[None, :]
    b_eff = bias.astype(jnp.float32) * one_m_alpha

    # Zero-pad to MXU/lane-friendly shapes; padded rows/cols never touch real lanes
    # (padded batch rows do accumulate bias-driven state but are sliced off).
    x_p = jnp.zeros((Tp, Bp, Kp), jnp.bfloat16).at[:T, :B, :K].set(
        input_spikes.astype(jnp.bfloat16))
    x_p = x_p.reshape(Tp * Bp, Kp)           # rows grouped per timestep

    w_p = jnp.zeros((Kp, Op), jnp.bfloat16).at[:K, :O].set(w_eff.astype(jnp.bfloat16))

    params = jnp.zeros((8, Op), jnp.float32)
    params = params.at[0, :O].set(alpha)
    params = params.at[1, :O].set(b_eff)
    params = params.at[2, :O].set(jnp.float32(vth))
    params = params.at[3, :O].set(jnp.float32(vth) * jnp.float32(dt))

    mem0_p = jnp.zeros((Bp, Op), jnp.float32).at[:B, :O].set(mem0.astype(jnp.float32))
    spike0_p = jnp.zeros((Bp, Op), jnp.float32).at[:B, :O].set(
        spike0.astype(jnp.float32))

    flops = 2.0 * Tp * Bp * Kp * Op + 5.0 * Tp * Bp * Op
    bytes_accessed = (x_p.size * 2 + w_p.size * 2 + params.size * 4
                      + (mem0_p.size + spike0_p.size) * 4
                      + Tp * Bp * Op * (4 + 2))

    mem_seq, spike_seq = pl.pallas_call(
        _snn_dense_chunk_kernel,
        out_shape=(
            jax.ShapeDtypeStruct((Tp * Bp, Op), jnp.float32),
            jax.ShapeDtypeStruct((Tp * Bp, Op), jnp.bfloat16),   # spikes exact in bf16
        ),
        grid_spec=pltpu.PrefetchScalarGridSpec(
            num_scalar_prefetch=0,
            grid=(n_chunks,),
            in_specs=[
                pl.BlockSpec((rows, Kp), lambda c: (c, 0)),   # x chunk streamed
                pl.BlockSpec((Kp, Op), lambda c: (0, 0)),     # W resident (DMA once)
                pl.BlockSpec((8, Op), lambda c: (0, 0)),      # packed params resident
                pl.BlockSpec((Bp, Op), lambda c: (0, 0)),     # mem0
                pl.BlockSpec((Bp, Op), lambda c: (0, 0)),     # spike0
            ],
            out_specs=(
                pl.BlockSpec((rows, Op), lambda c: (c, 0)),
                pl.BlockSpec((rows, Op), lambda c: (c, 0)),
            ),
            scratch_shapes=[pltpu.VMEM((Bp, Op), jnp.float32),   # mem carry
                            pltpu.VMEM((Bp, Op), jnp.float32)],  # spike carry
        ),
        compiler_params=pltpu.CompilerParams(
            dimension_semantics=("arbitrary",),        # time chunks are a recurrence
            vmem_limit_bytes=32 * 1024 * 1024),        # explicit, v7x-safe (64 MiB phys)
        cost_estimate=pl.CostEstimate(
            flops=int(flops), transcendentals=0,
            bytes_accessed=int(bytes_accessed)),
    )(x_p, w_p, params, mem0_p, spike0_p)

    mem_seq = mem_seq.reshape(Tp, Bp, Op)[:T, :B, :O]
    spike_seq = spike_seq.reshape(Tp, Bp, Op)[:T, :B, :O].astype(jnp.float32)
    return mem_seq, spike_seq


def spike_dense_forward(input_spike, weight_t, bias, mem, spike, vth, tau_m,
                        *, dt=4.0):
    """Single-step forward (exactly the original module's forward)."""
    mem_seq, spike_seq = spike_dense_forward_seq(
        input_spike[None], weight_t, bias, mem, spike, vth, tau_m, dt=dt)
    return mem_seq[0], spike_seq[0]


def reference_forward_seq(input_spikes, w_eff, b_eff, alpha, mem0, spike0, vth,
                          *, dt=4.0):
    """Pure-JAX reference using the same folded/rounded operands as the kernel."""
    alpha_row = alpha[None, :]

    def step(carry, x_t):
        mem, spike = carry
        d_eff = x_t @ w_eff + b_eff[None, :]                # == (1-alpha)*(x@W^T + b)
        mem_new = mem * alpha_row + d_eff - vth * dt * spike
        spike_new = (mem_new - vth > 0.0).astype(jnp.float32)
        return (mem_new, spike_new), (mem_new, spike_new)

    _, (mem_seq, spike_seq) = jax.lax.scan(step, (mem0, spike0), input_spikes)
    return mem_seq, spike_seq


if __name__ == "__main__":
    # SHD readout style: input_dim = hidden size, output_dim = 20 classes.
    T = 12
    batch = 6
    input_dim = 128
    output_dim = 20
    vth = 0.5
    dt = 4.0
    low_m, high_m = 0.0, 4.0

    key = jax.random.PRNGKey(0)
    k_x, k_w, k_b, k_tau, k_mem, k_spk = jax.random.split(key, 6)

    # nn.Linear default init: U(-1/sqrt(in), 1/sqrt(in)) for weight and bias.
    bound = 1.0 / math.sqrt(input_dim)
    weight_t = jax.random.uniform(k_w, (input_dim, output_dim), jnp.float32,
                                  -bound, bound)
    bias = jax.random.uniform(k_b, (output_dim,), jnp.float32, -bound, bound)
    tau_m = jax.random.uniform(k_tau, (output_dim,), jnp.float32, low_m, high_m)

    # set_neuron_state: mem, spike ~ U(0,1); v_th = vth * ones.
    mem0 = jax.random.uniform(k_mem, (batch, output_dim), jnp.float32)
    spike0 = jax.random.uniform(k_spk, (batch, output_dim), jnp.float32)

    # Binary input spike train, cast to float like input_spike.float().
    x = (jax.random.uniform(k_x, (T, batch, input_dim)) < 0.3).astype(jnp.float32)

    mem_seq, spike_seq = spike_dense_forward_seq(
        x, weight_t, bias, mem0, spike0, vth, tau_m, dt=dt)
    mem_seq = jax.block_until_ready(mem_seq)
    spike_seq = jax.block_until_ready(spike_seq)

    # Reference uses the SAME effective operands the kernel sees: (1-alpha) folded into
    # W/b, weight rounded to bf16 (spikes are exact in bf16), f32 everywhere else.
    alpha_f32 = jax.nn.sigmoid(tau_m)
    w_eff_ref = (weight_t * (1.0 - alpha_f32)[None, :]).astype(
        jnp.bfloat16).astype(jnp.float32)
    b_eff_ref = bias * (1.0 - alpha_f32)
    mem_ref, spike_ref = reference_forward_seq(
        x, w_eff_ref, b_eff_ref, alpha_f32, mem0, spike0, vth, dt=dt)

    assert jnp.allclose(mem_seq, mem_ref, atol=1e-4, rtol=1e-4)
    assert jnp.array_equal(spike_seq, spike_ref)

    # Also exercise the single-step API (== original module forward).
    m1, s1 = spike_dense_forward(x[0], weight_t, bias, mem0, spike0, vth, tau_m, dt=dt)
    m1 = jax.block_until_ready(m1)
    assert jnp.allclose(m1, mem_ref[0], atol=1e-4, rtol=1e-4)
    assert jnp.array_equal(s1, spike_ref[0])

    print("KERNEL_OK")
</pallas_src>

<mosaic_0001>
module attributes {stable_mosaic.version = 11 : i64} {
  func.func @_snn_dense_chunk_kernel(%arg0: i32, %arg1: memref<96x128xbf16, #tpu.memory_space<vmem>>, %arg2: memref<128x128xbf16, #tpu.memory_space<vmem>>, %arg3: memref<8x128xf32, #tpu.memory_space<vmem>>, %arg4: memref<8x128xf32, #tpu.memory_space<vmem>>, %arg5: memref<8x128xf32, #tpu.memory_space<vmem>>, %arg6: memref<96x128xf32, #tpu.memory_space<vmem>>, %arg7: memref<96x128xbf16, #tpu.memory_space<vmem>>, %arg8: memref<8x128xf32, #tpu.memory_space<vmem>>, %arg9: memref<8x128xf32, #tpu.memory_space<vmem>>) attributes {dimension_semantics = [#tpu.dimension_semantics<arbitrary>], iteration_bounds = array<i64: 1>, scalar_prefetch = 0 : i64, scratch_operands = 2 : i64, tpu.core_type = #tpu.core_type<tc>, window_params = [{transform_indices = @transform_0, window_bounds = array<i64: 96, 128>}, {pipeline_mode = #tpu.pipeline_mode<synchronous>, transform_indices = @transform_1, window_bounds = array<i64: 128, 128>}, {pipeline_mode = #tpu.pipeline_mode<synchronous>, transform_indices = @transform_2, window_bounds = array<i64: 8, 128>}, {pipeline_mode = #tpu.pipeline_mode<synchronous>, transform_indices = @transform_3, window_bounds = array<i64: 8, 128>}, {pipeline_mode = #tpu.pipeline_mode<synchronous>, transform_indices = @transform_4, window_bounds = array<i64: 8, 128>}, {transform_indices = @transform_5, window_bounds = array<i64: 96, 128>}, {transform_indices = @transform_6, window_bounds = array<i64: 96, 128>}]} {
    %c0_i32 = arith.constant 0 : i32
    %0 = arith.cmpi eq, %arg0, %c0_i32 : i32
    %1 = arith.extui %0 : i1 to i32
    %c0_i32_0 = arith.constant 0 : i32
    %2 = arith.cmpi ne, %1, %c0_i32_0 : i32
    scf.if %2 {
      %c0_66 = arith.constant 0 : index
      %c0_67 = arith.constant 0 : index
      %178 = vector.load %arg4[%c0_66, %c0_67] : memref<8x128xf32, #tpu.memory_space<vmem>>, vector<8x128xf32>
      %c0_68 = arith.constant 0 : index
      %c0_69 = arith.constant 0 : index
      %179 = vector.load %arg8[%c0_68, %c0_69] : memref<8x128xf32, #tpu.memory_space<vmem>>, vector<8x128xf32>
      tpu.vector_store %arg8[%c0_68, %c0_69], %178 {strides = array<i32>} : memref<8x128xf32, #tpu.memory_space<vmem>>, vector<8x128xf32>,
      %c0_70 = arith.constant 0 : index
      %c0_71 = arith.constant 0 : index
      %180 = vector.load %arg5[%c0_70, %c0_71] : memref<8x128xf32, #tpu.memory_space<vmem>>, vector<8x128xf32>
      %c0_72 = arith.constant 0 : index
      %c0_73 = arith.constant 0 : index
      %181 = vector.load %arg9[%c0_72, %c0_73] : memref<8x128xf32, #tpu.memory_space<vmem>>, vector<8x128xf32>
      tpu.vector_store %arg9[%c0_72, %c0_73], %180 {strides = array<i32>} : memref<8x128xf32, #tpu.memory_space<vmem>>, vector<8x128xf32>,
    } else {
    }
    %c0 = arith.constant 0 : index
    %c0_1 = arith.constant 0 : index
    %3 = vector.load %arg3[%c0, %c0_1] : memref<8x128xf32, #tpu.memory_space<vmem>>, vector<1x128xf32>
    %4 = vector.shape_cast %3 : vector<1x128xf32> to vector<1x128xf32>
    %5 = vector.broadcast %4 : vector<1x128xf32> to vector<8x128xf32>
    %c1 = arith.constant 1 : index
    %c0_2 = arith.constant 0 : index
    %6 = vector.load %arg3[%c1, %c0_2] : memref<8x128xf32, #tpu.memory_space<vmem>>, vector<1x128xf32>
    %c2 = arith.constant 2 : index
    %c0_3 = arith.constant 0 : index
    %7 = vector.load %arg3[%c2, %c0_3] : memref<8x128xf32, #tpu.memory_space<vmem>>, vector<1x128xf32>
    %8 = vector.shape_cast %7 : vector<1x128xf32> to vector<1x128xf32>
    %9 = vector.broadcast %8 : vector<1x128xf32> to vector<8x128xf32>
    %c3 = arith.constant 3 : index
    %c0_4 = arith.constant 0 : index
    %10 = vector.load %arg3[%c3, %c0_4] : memref<8x128xf32, #tpu.memory_space<vmem>>, vector<1x128xf32>
    %11 = vector.shape_cast %10 : vector<1x128xf32> to vector<1x128xf32>
    %12 = vector.broadcast %11 : vector<1x128xf32> to vector<8x128xf32>
    %c0_5 = arith.constant 0 : index
    %c0_6 = arith.constant 0 : index
    %13 = vector.load %arg1[%c0_5, %c0_6] : memref<96x128xbf16, #tpu.memory_space<vmem>>, vector<96x128xbf16>
    %c0_7 = arith.constant 0 : index
    %c0_8 = arith.constant 0 : index
    %14 = vector.load %arg2[%c0_7, %c0_8] : memref<128x128xbf16, #tpu.memory_space<vmem>>, vector<128x128xbf16>
    %cst = arith.constant dense<0.000000e+00> : vector<96x128xf32>
    %15 = tpu.matmul %13, %14, %cst {dimension_numbers = #tpu.dot_dimension_numbers<[1], [0], [0], [1], [0, 0, 1, 1], [], []>} : vector<96x128xbf16>, vector<128x128xbf16>, vector<96x128xf32> -> vector<96x128xf32>
    %16 = vector.broadcast %6 : vector<1x128xf32> to vector<96x128xf32>
    %17 = arith.addf %15, %16 : vector<96x128xf32>
    %c0_9 = arith.constant 0 : index
    %c0_10 = arith.constant 0 : index
    %18 = vector.load %arg8[%c0_9, %c0_10] : memref<8x128xf32, #tpu.memory_space<vmem>>, vector<8x128xf32>
    %c0_11 = arith.constant 0 : index
    %c0_12 = arith.constant 0 : index
    %19 = vector.load %arg9[%c0_11, %c0_12] : memref<8x128xf32, #tpu.memory_space<vmem>>, vector<8x128xf32>
    %20 = vector.extract_strided_slice %17 {offsets = [0, 0], sizes = [8, 128], strides = [1, 1]} : vector<96x128xf32> to vector<8x128xf32>
    %21 = arith.mulf %18, %5 : vector<8x128xf32>
    %22 = arith.addf %21, %20 : vector<8x128xf32>
    %23 = arith.mulf %12, %19 : vector<8x128xf32>
    %24 = arith.subf %22, %23 : vector<8x128xf32>
    %25 = arith.subf %24, %9 : vector<8x128xf32>
    %cst_13 = arith.constant 0.000000e+00 : f32
    %26 = vector.broadcast %cst_13 : f32 to vector<8x128xf32>
    %27 = arith.cmpf ogt, %25, %26 : vector<8x128xf32>
    %28 = arith.extui %27 : vector<8x128xi1> to vector<8x128xi32>
    %29 = arith.sitofp %28 : vector<8x128xi32> to vector<8x128xf32>
    %c0_14 = arith.constant 0 : index
    %c0_15 = arith.constant 0 : index
    %30 = vector.load %arg6[%c0_14, %c0_15] : memref<96x128xf32, #tpu.memory_space<vmem>>, vector<8x128xf32>
    tpu.vector_store %arg6[%c0_14, %c0_15], %24 {strides = array<i32>} : memref<96x128xf32, #tpu.memory_space<vmem>>, vector<8x128xf32>,
    %31 = arith.truncf %29 : vector<8x128xf32> to vector<8x128xbf16>
    %c0_16 = arith.constant 0 : index
    %c0_17 = arith.constant 0 : index
    %32 = vector.load %arg7[%c0_16, %c0_17] : memref<96x128xbf16, #tpu.memory_space<vmem>>, vector<8x128xbf16>
    tpu.vector_store %arg7[%c0_16, %c0_17], %31 {strides = array<i32>} : memref<96x128xbf16, #tpu.memory_space<vmem>>, vector<8x128xbf16>,
    %33 = vector.extract_strided_slice %17 {offsets = [8, 0], sizes = [8, 128], strides = [1, 1]} : vector<96x128xf32> to vector<8x128xf32>
    %34 = arith.mulf %24, %5 : vector<8x128xf32>
    %35 = arith.addf %34, %33 : vector<8x128xf32>
    %36 = arith.mulf %12, %29 : vector<8x128xf32>
    %37 = arith.subf %35, %36 : vector<8x128xf32>
    %38 = arith.subf %37, %9 : vector<8x128xf32>
    %cst_18 = arith.constant 0.000000e+00 : f32
    %39 = vector.broadcast %cst_18 : f32 to vector<8x128xf32>
    %40 = arith.cmpf ogt, %38, %39 : vector<8x128xf32>
    %41 = arith.extui %40 : vector<8x128xi1> to vector<8x128xi32>
    %42 = arith.sitofp %41 : vector<8x128xi32> to vector<8x128xf32>
    %c8 = arith.constant 8 : index
    %c0_19 = arith.constant 0 : index
    %43 = vector.load %arg6[%c8, %c0_19] : memref<96x128xf32, #tpu.memory_space<vmem>>, vector<8x128xf32>
    tpu.vector_store %arg6[%c8, %c0_19], %37 {strides = array<i32>} : memref<96x128xf32, #tpu.memory_space<vmem>>, vector<8x128xf32>,
    %44 = arith.truncf %42 : vector<8x128xf32> to vector<8x128xbf16>
    %c8_20 = arith.constant 8 : index
    %c0_21 = arith.constant 0 : index
    %45 = vector.load %arg7[%c8_20, %c0_21] : memref<96x128xbf16, #tpu.memory_space<vmem>>, vector<8x128xbf16>
    tpu.vector_store %arg7[%c8_20, %c0_21], %44 {strides = array<i32>} : memref<96x128xbf16, #tpu.memory_space<vmem>>, vector<8x128xbf16>,
    %46 = vector.extract_strided_slice %17 {offsets = [16, 0], sizes = [8, 128], strides = [1, 1]} : vector<96x128xf32> to vector<8x128xf32>
    %47 = arith.mulf %37, %5 : vector<8x128xf32>
    %48 = arith.addf %47, %46 : vector<8x128xf32>
    %49 = arith.mulf %12, %42 : vector<8x128xf32>
    %50 = arith.subf %48, %49 : vector<8x128xf32>
    %51 = arith.subf %50, %9 : vector<8x128xf32>
    %cst_22 = arith.constant 0.000000e+00 : f32
    %52 = vector.broadcast %cst_22 : f32 to vector<8x128xf32>
    %53 = arith.cmpf ogt, %51, %52 : vector<8x128xf32>
    %54 = arith.extui %53 : vector<8x128xi1> to vector<8x128xi32>
    %55 = arith.sitofp %54 : vector<8x128xi32> to vector<8x128xf32>
    %c16 = arith.constant 16 : index
    %c0_23 = arith.constant 0 : index
    %56 = vector.load %arg6[%c16, %c0_23] : memref<96x128xf32, #tpu.memory_space<vmem>>, vector<8x128xf32>
    tpu.vector_store %arg6[%c16, %c0_23], %50 {strides = array<i32>} : memref<96x128xf32, #tpu.memory_space<vmem>>, vector<8x128xf32>,
    %57 = arith.truncf %55 : vector<8x128xf32> to vector<8x128xbf16>
    %c16_24 = arith.constant 16 : index
    %c0_25 = arith.constant 0 : index
    %58 = vector.load %arg7[%c16_24, %c0_25] : memref<96x128xbf16, #tpu.memory_space<vmem>>, vector<8x128xbf16>
    tpu.vector_store %arg7[%c16_24, %c0_25], %57 {strides = array<i32>} : memref<96x128xbf16, #tpu.memory_space<vmem>>, vector<8x128xbf16>,
    %59 = vector.extract_strided_slice %17 {offsets = [24, 0], sizes = [8, 128], strides = [1, 1]} : vector<96x128xf32> to vector<8x128xf32>
    %60 = arith.mulf %50, %5 : vector<8x128xf32>
    %61 = arith.addf %60, %59 : vector<8x128xf32>
    %62 = arith.mulf %12, %55 : vector<8x128xf32>
    %63 = arith.subf %61, %62 : vector<8x128xf32>
    %64 = arith.subf %63, %9 : vector<8x128xf32>
    %cst_26 = arith.constant 0.000000e+00 : f32
    %65 = vector.broadcast %cst_26 : f32 to vector<8x128xf32>
    %66 = arith.cmpf ogt, %64, %65 : vector<8x128xf32>
    %67 = arith.extui %66 : vector<8x128xi1> to vector<8x128xi32>
    %68 = arith.sitofp %67 : vector<8x128xi32> to vector<8x128xf32>
    %c24 = arith.constant 24 : index
    %c0_27 = arith.constant 0 : index
    %69 = vector.load %arg6[%c24, %c0_27] : memref<96x128xf32, #tpu.memory_space<vmem>>, vector<8x128xf32>
    tpu.vector_store %arg6[%c24, %c0_27], %63 {strides = array<i32>} : memref<96x128xf32, #tpu.memory_space<vmem>>, vector<8x128xf32>,
    %70 = arith.truncf %68 : vector<8x128xf32> to vector<8x128xbf16>
    %c24_28 = arith.constant 24 : index
    %c0_29 = arith.constant 0 : index
    %71 = vector.load %arg7[%c24_28, %c0_29] : memref<96x128xbf16, #tpu.memory_space<vmem>>, vector<8x128xbf16>
    tpu.vector_store %arg7[%c24_28, %c0_29], %70 {strides = array<i32>} : memref<96x128xbf16, #tpu.memory_space<vmem>>, vector<8x128xbf16>,
    %72 = vector.extract_strided_slice %17 {offsets = [32, 0], sizes = [8, 128], strides = [1, 1]} : vector<96x128xf32> to vector<8x128xf32>
    %73 = arith.mulf %63, %5 : vector<8x128xf32>
    %74 = arith.addf %73, %72 : vector<8x128xf32>
    %75 = arith.mulf %12, %68 : vector<8x128xf32>
    %76 = arith.subf %74, %75 : vector<8x128xf32>
    %77 = arith.subf %76, %9 : vector<8x128xf32>
    %cst_30 = arith.constant 0.000000e+00 : f32
    %78 = vector.broadcast %cst_30 : f32 to vector<8x128xf32>
    %79 = arith.cmpf ogt, %77, %78 : vector<8x128xf32>
    %80 = arith.extui %79 : vector<8x128xi1> to vector<8x128xi32>
    %81 = arith.sitofp %80 : vector<8x128xi32> to vector<8x128xf32>
    %c32 = arith.constant 32 : index
    %c0_31 = arith.constant 0 : index
    %82 = vector.load %arg6[%c32, %c0_31] : memref<96x128xf32, #tpu.memory_space<vmem>>, vector<8x128xf32>
    tpu.vector_store %arg6[%c32, %c0_31], %76 {strides = array<i32>} : memref<96x128xf32, #tpu.memory_space<vmem>>, vector<8x128xf32>,
    %83 = arith.truncf %81 : vector<8x128xf32> to vector<8x128xbf16>
    %c32_32 = arith.constant 32 : index
    %c0_33 = arith.constant 0 : index
    %84 = vector.load %arg7[%c32_32, %c0_33] : memref<96x128xbf16, #tpu.memory_space<vmem>>, vector<8x128xbf16>
    tpu.vector_store %arg7[%c32_32, %c0_33], %83 {strides = array<i32>} : memref<96x128xbf16, #tpu.memory_space<vmem>>, vector<8x128xbf16>,
    %85 = vector.extract_strided_slice %17 {offsets = [40, 0], sizes = [8, 128], strides = [1, 1]} : vector<96x128xf32> to vector<8x128xf32>
    %86 = arith.mulf %76, %5 : vector<8x128xf32>
    %87 = arith.addf %86, %85 : vector<8x128xf32>
    %88 = arith.mulf %12, %81 : vector<8x128xf32>
    %89 = arith.subf %87, %88 : vector<8x128xf32>
    %90 = arith.subf %89, %9 : vector<8x128xf32>
    %cst_34 = arith.constant 0.000000e+00 : f32
    %91 = vector.broadcast %cst_34 : f32 to vector<8x128xf32>
    %92 = arith.cmpf ogt, %90, %91 : vector<8x128xf32>
    %93 = arith.extui %92 : vector<8x128xi1> to vector<8x128xi32>
    %94 = arith.sitofp %93 : vector<8x128xi32> to vector<8x128xf32>
    %c40 = arith.constant 40 : index
    %c0_35 = arith.constant 0 : index
    %95 = vector.load %arg6[%c40, %c0_35] : memref<96x128xf32, #tpu.memory_space<vmem>>, vector<8x128xf32>
    tpu.vector_store %arg6[%c40, %c0_35], %89 {strides = array<i32>} : memref<96x128xf32, #tpu.memory_space<vmem>>, vector<8x128xf32>,
    %96 = arith.truncf %94 : vector<8x128xf32> to vector<8x128xbf16>
    %c40_36 = arith.constant 40 : index
    %c0_37 = arith.constant 0 : index
    %97 = vector.load %arg7[%c40_36, %c0_37] : memref<96x128xbf16, #tpu.memory_space<vmem>>, vector<8x128xbf16>
    tpu.vector_store %arg7[%c40_36, %c0_37], %96 {strides = array<i32>} : memref<96x128xbf16, #tpu.memory_space<vmem>>, vector<8x128xbf16>,
    %98 = vector.extract_strided_slice %17 {offsets = [48, 0], sizes = [8, 128], strides = [1, 1]} : vector<96x128xf32> to vector<8x128xf32>
    %99 = arith.mulf %89, %5 : vector<8x128xf32>
    %100 = arith.addf %99, %98 : vector<8x128xf32>
    %101 = arith.mulf %12, %94 : vector<8x128xf32>
    %102 = arith.subf %100, %101 : vector<8x128xf32>
    %103 = arith.subf %102, %9 : vector<8x128xf32>
    %cst_38 = arith.constant 0.000000e+00 : f32
    %104 = vector.broadcast %cst_38 : f32 to vector<8x128xf32>
    %105 = arith.cmpf ogt, %103, %104 : vector<8x128xf32>
    %106 = arith.extui %105 : vector<8x128xi1> to vector<8x128xi32>
    %107 = arith.sitofp %106 : vector<8x128xi32> to vector<8x128xf32>
    %c48 = arith.constant 48 : index
    %c0_39 = arith.constant 0 : index
    %108 = vector.load %arg6[%c48, %c0_39] : memref<96x128xf32, #tpu.memory_space<vmem>>, vector<8x128xf32>
    tpu.vector_store %arg6[%c48, %c0_39], %102 {strides = array<i32>} : memref<96x128xf32, #tpu.memory_space<vmem>>, vector<8x128xf32>,
    %109 = arith.truncf %107 : vector<8x128xf32> to vector<8x128xbf16>
    %c48_40 = arith.constant 48 : index
    %c0_41 = arith.constant 0 : index
    %110 = vector.load %arg7[%c48_40, %c0_41] : memref<96x128xbf16, #tpu.memory_space<vmem>>, vector<8x128xbf16>
    tpu.vector_store %arg7[%c48_40, %c0_41], %109 {strides = array<i32>} : memref<96x128xbf16, #tpu.memory_space<vmem>>, vector<8x128xbf16>,
    %111 = vector.extract_strided_slice %17 {offsets = [56, 0], sizes = [8, 128], strides = [1, 1]} : vector<96x128xf32> to vector<8x128xf32>
    %112 = arith.mulf %102, %5 : vector<8x128xf32>
    %113 = arith.addf %112, %111 : vector<8x128xf32>
    %114 = arith.mulf %12, %107 : vector<8x128xf32>
    %115 = arith.subf %113, %114 : vector<8x128xf32>
    %116 = arith.subf %115, %9 : vector<8x128xf32>
    %cst_42 = arith.constant 0.000000e+00 : f32
    %117 = vector.broadcast %cst_42 : f32 to vector<8x128xf32>
    %118 = arith.cmpf ogt, %116, %117 : vector<8x128xf32>
    %119 = arith.extui %118 : vector<8x128xi1> to vector<8x128xi32>
    %120 = arith.sitofp %119 : vector<8x128xi32> to vector<8x128xf32>
    %c56 = arith.constant 56 : index
    %c0_43 = arith.constant 0 : index
    %121 = vector.load %arg6[%c56, %c0_43] : memref<96x128xf32, #tpu.memory_space<vmem>>, vector<8x128xf32>
    tpu.vector_store %arg6[%c56, %c0_43], %115 {strides = array<i32>} : memref<96x128xf32, #tpu.memory_space<vmem>>, vector<8x128xf32>,
    %122 = arith.truncf %120 : vector<8x128xf32> to vector<8x128xbf16>
    %c56_44 = arith.constant 56 : index
    %c0_45 = arith.constant 0 : index
    %123 = vector.load %arg7[%c56_44, %c0_45] : memref<96x128xbf16, #tpu.memory_space<vmem>>, vector<8x128xbf16>
    tpu.vector_store %arg7[%c56_44, %c0_45], %122 {strides = array<i32>} : memref<96x128xbf16, #tpu.memory_space<vmem>>, vector<8x128xbf16>,
    %124 = vector.extract_strided_slice %17 {offsets = [64, 0], sizes = [8, 128], strides = [1, 1]} : vector<96x128xf32> to vector<8x128xf32>
    %125 = arith.mulf %115, %5 : vector<8x128xf32>
    %126 = arith.addf %125, %124 : vector<8x128xf32>
    %127 = arith.mulf %12, %120 : vector<8x128xf32>
    %128 = arith.subf %126, %127 : vector<8x128xf32>
    %129 = arith.subf %128, %9 : vector<8x128xf32>
    %cst_46 = arith.constant 0.000000e+00 : f32
    %130 = vector.broadcast %cst_46 : f32 to vector<8x128xf32>
    %131 = arith.cmpf ogt, %129, %130 : vector<8x128xf32>
    %132 = arith.extui %131 : vector<8x128xi1> to vector<8x128xi32>
    %133 = arith.sitofp %132 : vector<8x128xi32> to vector<8x128xf32>
    %c64 = arith.constant 64 : index
    %c0_47 = arith.constant 0 : index
    %134 = vector.load %arg6[%c64, %c0_47] : memref<96x128xf32, #tpu.memory_space<vmem>>, vector<8x128xf32>
    tpu.vector_store %arg6[%c64, %c0_47], %128 {strides = array<i32>} : memref<96x128xf32, #tpu.memory_space<vmem>>, vector<8x128xf32>,
    %135 = arith.truncf %133 : vector<8x128xf32> to vector<8x128xbf16>
    %c64_48 = arith.constant 64 : index
    %c0_49 = arith.constant 0 : index
    %136 = vector.load %arg7[%c64_48, %c0_49] : memref<96x128xbf16, #tpu.memory_space<vmem>>, vector<8x128xbf16>
    tpu.vector_store %arg7[%c64_48, %c0_49], %135 {strides = array<i32>} : memref<96x128xbf16, #tpu.memory_space<vmem>>, vector<8x128xbf16>,
    %137 = vector.extract_strided_slice %17 {offsets = [72, 0], sizes = [8, 128], strides = [1, 1]} : vector<96x128xf32> to vector<8x128xf32>
    %138 = arith.mulf %128, %5 : vector<8x128xf32>
    %139 = arith.addf %138, %137 : vector<8x128xf32>
    %140 = arith.mulf %12, %133 : vector<8x128xf32>
    %141 = arith.subf %139, %140 : vector<8x128xf32>
    %142 = arith.subf %141, %9 : vector<8x128xf32>
    %cst_50 = arith.constant 0.000000e+00 : f32
    %143 = vector.broadcast %cst_50 : f32 to vector<8x128xf32>
    %144 = arith.cmpf ogt, %142, %143 : vector<8x128xf32>
    %145 = arith.extui %144 : vector<8x128xi1> to vector<8x128xi32>
    %146 = arith.sitofp %145 : vector<8x128xi32> to vector<8x128xf32>
    %c72 = arith.constant 72 : index
    %c0_51 = arith.constant 0 : index
    %147 = vector.load %arg6[%c72, %c0_51] : memref<96x128xf32, #tpu.memory_space<vmem>>, vector<8x128xf32>
    tpu.vector_store %arg6[%c72, %c0_51], %141 {strides = array<i32>} : memref<96x128xf32, #tpu.memory_space<vmem>>, vector<8x128xf32>,
    %148 = arith.truncf %146 : vector<8x128xf32> to vector<8x128xbf16>
    %c72_52 = arith.constant 72 : index
    %c0_53 = arith.constant 0 : index
    %149 = vector.load %arg7[%c72_52, %c0_53] : memref<96x128xbf16, #tpu.memory_space<vmem>>, vector<8x128xbf16>
    tpu.vector_store %arg7[%c72_52, %c0_53], %148 {strides = array<i32>} : memref<96x128xbf16, #tpu.memory_space<vmem>>, vector<8x128xbf16>,
    %150 = vector.extract_strided_slice %17 {offsets = [80, 0], sizes = [8, 128], strides = [1, 1]} : vector<96x128xf32> to vector<8x128xf32>
    %151 = arith.mulf %141, %5 : vector<8x128xf32>
    %152 = arith.addf %151, %150 : vector<8x128xf32>
    %153 = arith.mulf %12, %146 : vector<8x128xf32>
    %154 = arith.subf %152, %153 : vector<8x128xf32>
    %155 = arith.subf %154, %9 : vector<8x128xf32>
    %cst_54 = arith.constant 0.000000e+00 : f32
    %156 = vector.broadcast %cst_54 : f32 to vector<8x128xf32>
    %157 = arith.cmpf ogt, %155, %156 : vector<8x128xf32>
    %158 = arith.extui %157 : vector<8x128xi1> to vector<8x128xi32>
    %159 = arith.sitofp %158 : vector<8x128xi32> to vector<8x128xf32>
    %c80 = arith.constant 80 : index
    %c0_55 = arith.constant 0 : index
    %160 = vector.load %arg6[%c80, %c0_55] : memref<96x128xf32, #tpu.memory_space<vmem>>, vector<8x128xf32>
    tpu.vector_store %arg6[%c80, %c0_55], %154 {strides = array<i32>} : memref<96x128xf32, #tpu.memory_space<vmem>>, vector<8x128xf32>,
    %161 = arith.truncf %159 : vector<8x128xf32> to vector<8x128xbf16>
    %c80_56 = arith.constant 80 : index
    %c0_57 = arith.constant 0 : index
    %162 = vector.load %arg7[%c80_56, %c0_57] : memref<96x128xbf16, #tpu.memory_space<vmem>>, vector<8x128xbf16>
    tpu.vector_store %arg7[%c80_56, %c0_57], %161 {strides = array<i32>} : memref<96x128xbf16, #tpu.memory_space<vmem>>, vector<8x128xbf16>,
    %163 = vector.extract_strided_slice %17 {offsets = [88, 0], sizes = [8, 128], strides = [1, 1]} : vector<96x128xf32> to vector<8x128xf32>
    %164 = arith.mulf %154, %5 : vector<8x128xf32>
    %165 = arith.addf %164, %163 : vector<8x128xf32>
    %166 = arith.mulf %12, %159 : vector<8x128xf32>
    %167 = arith.subf %165, %166 : vector<8x128xf32>
    %168 = arith.subf %167, %9 : vector<8x128xf32>
    %cst_58 = arith.constant 0.000000e+00 : f32
    %169 = vector.broadcast %cst_58 : f32 to vector<8x128xf32>
    %170 = arith.cmpf ogt, %168, %169 : vector<8x128xf32>
    %171 = arith.extui %170 : vector<8x128xi1> to vector<8x128xi32>
    %172 = arith.sitofp %171 : vector<8x128xi32> to vector<8x128xf32>
    %c88 = arith.constant 88 : index
    %c0_59 = arith.constant 0 : index
    %173 = vector.load %arg6[%c88, %c0_59] : memref<96x128xf32, #tpu.memory_space<vmem>>, vector<8x128xf32>
    tpu.vector_store %arg6[%c88, %c0_59], %167 {strides = array<i32>} : memref<96x128xf32, #tpu.memory_space<vmem>>, vector<8x128xf32>,
    %174 = arith.truncf %172 : vector<8x128xf32> to vector<8x128xbf16>
    %c88_60 = arith.constant 88 : index
    %c0_61 = arith.constant 0 : index
    %175 = vector.load %arg7[%c88_60, %c0_61] : memref<96x128xbf16, #tpu.memory_space<vmem>>, vector<8x128xbf16>
    tpu.vector_store %arg7[%c88_60, %c0_61], %174 {strides = array<i32>} : memref<96x128xbf16, #tpu.memory_space<vmem>>, vector<8x128xbf16>,
    %c0_62 = arith.constant 0 : index
    %c0_63 = arith.constant 0 : index
    %176 = vector.load %arg8[%c0_62, %c0_63] : memref<8x128xf32, #tpu.memory_space<vmem>>, vector<8x128xf32>
    tpu.vector_store %arg8[%c0_62, %c0_63], %167 {strides = array<i32>} : memref<8x128xf32, #tpu.memory_space<vmem>>, vector<8x128xf32>,
    %c0_64 = arith.constant 0 : index
    %c0_65 = arith.constant 0 : index
    %177 = vector.load %arg9[%c0_64, %c0_65] : memref<8x128xf32, #tpu.memory_space<vmem>>, vector<8x128xf32>
    tpu.vector_store %arg9[%c0_64, %c0_65], %172 {strides = array<i32>} : memref<8x128xf32, #tpu.memory_space<vmem>>, vector<8x128xf32>,
    return
  }
  func.func @transform_0(%arg0: i32) -> (i32, i32) {
    %c0_i32 = arith.constant 0 : i32
    %c0_i32_0 = arith.constant 0 : i32
    return %arg0, %c0_i32 : i32, i32
  }
  func.func @transform_1(%arg0: i32) -> (i32, i32) {
    %c0_i32 = arith.constant 0 : i32
    %c0_i32_0 = arith.constant 0 : i32
    %c0_i32_1 = arith.constant 0 : i32
    return %c0_i32, %c0_i32_0 : i32, i32
  }
  func.func @transform_2(%arg0: i32) -> (i32, i32) {
    %c0_i32 = arith.constant 0 : i32
    %c0_i32_0 = arith.constant 0 : i32
    %c0_i32_1 = arith.constant 0 : i32
    return %c0_i32, %c0_i32_0 : i32, i32
  }
  func.func @transform_3(%arg0: i32) -> (i32, i32) {
    %c0_i32 = arith.constant 0 : i32
    %c0_i32_0 = arith.constant 0 : i32
    %c0_i32_1 = arith.constant 0 : i32
    return %c0_i32, %c0_i32_0 : i32, i32
  }
  func.func @transform_4(%arg0: i32) -> (i32, i32) {
    %c0_i32 = arith.constant 0 : i32
    %c0_i32_0 = arith.constant 0 : i32
    %c0_i32_1 = arith.constant 0 : i32
    return %c0_i32, %c0_i32_0 : i32, i32
  }
  func.func @transform_5(%arg0: i32) -> (i32, i32) {
    %c0_i32 = arith.constant 0 : i32
    %c0_i32_0 = arith.constant 0 : i32
    return %arg0, %c0_i32 : i32, i32
  }
  func.func @transform_6(%arg0: i32) -> (i32, i32) {
    %c0_i32 = arith.constant 0 : i32
    %c0_i32_0 = arith.constant 0 : i32
    return %arg0, %c0_i32 : i32, i32
  }
}

</mosaic_0001>

<llo_original>
// kernel: tpu_custom_call.1
$region0: #{tpu_custom_call.1}
  #allocation0 [shape = 'u32[]', space=smem, size = 0x4, offset = 0x4, fixed_abs, tag = 'smem constant byte address 0x4 - core index']
  #allocation1 [shape = 'u32[144,128]{1,0:T(1,128)}', space=vmem, size = 0x12000, scoped, tag = 'internal scratch']
  #allocation2 [shape = 'f32[8,128]{1,0:T(8,128)}', space=vmem, size = 0x1000, scoped, tag = 'scratch operand']
  #allocation3 [shape = 'f32[8,128]{1,0:T(8,128)}', space=vmem, size = 0x1000, scoped, tag = 'scratch operand']
  %s0 = inlined_call_operand.hbm [shape: bf16[96,128], index: 0, kind: input, shape index: {}]
  %s1 = inlined_call_operand.hbm [shape: bf16[128,128], index: 1, kind: input, shape index: {}]
  %s2 = inlined_call_operand.hbm [shape: f32[8,128], index: 2, kind: input, shape index: {}]
  %s3 = inlined_call_operand.vmem [shape: f32[8,128], index: 3, kind: input, shape index: {}]
  %s4 = inlined_call_operand.hbm [shape: f32[8,128], index: 4, kind: input, shape index: {}]
  %s5 = inlined_call_operand.hbm [shape: f32[96,128], index: 5, kind: output, shape index: {0}]
  %s6 = inlined_call_operand.hbm [shape: bf16[96,128], index: 6, kind: output, shape index: {1}]
  %7 = xla_tuple %s5, %s6
  %s8 = sld [smem:[#allocation0]]
  $region58: #{tpu_custom_call.1} parent=0
    _
  %s10 = ssub.s32 1, %s8
  %s11 = scalar_select 0, %s10, %s8
  $region1: #{tpu_custom_call.1} parent=0
    #allocation4 [shape = 'u8[24576]{0}', space=vmem, size = 0x6000, scoped, tag = 'input window, operand 0, single buffered']
    #allocation5 [shape = 's32[1]{0}', space=sflag, size = 0x4, scoped, tag = 'scoped memory for tpu_custom_call.1']
    #allocation6 [shape = 's32[1]{0}', space=sflag, size = 0x4, scoped, tag = 'scoped memory for tpu_custom_call.1']
    #allocation7 [shape = 'u8[32768]{0}', space=vmem, size = 0x8000, scoped, tag = 'input window, operand 1, single buffered']
    #allocation8 [shape = 's32[1]{0}', space=sflag, size = 0x4, scoped, tag = 'scoped memory for tpu_custom_call.1']
    #allocation9 [shape = 'u8[4096]{0}', space=vmem, size = 0x1000, scoped, tag = 'input window, operand 2, single buffered']
    #allocation10 [shape = 'u8[4096]{0}', space=vmem, size = 0x1000, scoped, tag = 'input window, operand 4, single buffered']
    #allocation11 [shape = 's32[1]{0}', space=sflag, size = 0x4, scoped, tag = 'scoped memory for tpu_custom_call.1']
    #allocation12 [shape = 'u8[49152]{0}', space=vmem, size = 0xc000, scoped, tag = 'output window, operand 0, single buffered']
    #allocation13 [shape = 'u8[24576]{0}', space=vmem, size = 0x6000, scoped, tag = 'output window, operand 1, single buffered']
    #allocation14 [shape = 's32[1]{0}', space=sflag, size = 0x4, scoped, tag = 'scoped memory for tpu_custom_call.1']
    %12 = vsyncpa [#allocation5], 0
    %13 = vsyncpa [#allocation8], 0
    %14 = vsyncpa [#allocation11], 0
    %15 = vsyncpa [#allocation6], 0
    %16 = vsyncpa [#allocation14], 0
    // Predicated region
    $region2: #{tpu_custom_call.1} parent=1 // pred_check
      _
    $region3: #{tpu_custom_call.1} parent=1 // pred_check_branch
      %18 = sbr.rel (0) target = $region5
    $region4: #{tpu_custom_call.1} parent=1 // pred_region
      %s20 = ssub.s32 768, 768
      %21 = vsyncadd [#allocation5], %s20
      %s22 = sshll.u32 [#allocation4], 4
      %s23 = int_to_ptr.vmem [resolvable:$true] %s22
      %28 = dma.hbm_to_vmem [thread:$0]  %s0, 768, %s23, [#allocation5], 64, 64, 4
    $region5: #{tpu_custom_call.1} parent=1 // pred_fallthru
      _
    // Predicated region
    $region6: #{tpu_custom_call.1} parent=1 // pred_check
      _
    $region7: #{tpu_custom_call.1} parent=1 // pred_check_branch
      %30 = sbr.rel (0) target = $region9
    $region8: #{tpu_custom_call.1} parent=1 // pred_region
      %s32 = ssub.s32 1024, 1024
      %33 = vsyncadd [#allocation8], %s32
      %s34 = sshll.u32 [#allocation7], 4
      %s35 = int_to_ptr.vmem [resolvable:$true] %s34
      %40 = dma.hbm_to_vmem [thread:$0]  %s1, 1024, %s35, [#allocation8], 64, 64, 4
    $region9: #{tpu_custom_call.1} parent=1 // pred_fallthru
      _
    // Predicated region
    $region10: #{tpu_custom_call.1} parent=1 // pred_check
      _
    $region11: #{tpu_custom_call.1} parent=1 // pred_check_branch
      %42 = sbr.rel (0) target = $region13
    $region12: #{tpu_custom_call.1} parent=1 // pred_region
      %s44 = ssub.s32 128, 128
      %45 = vsyncadd [#allocation8], %s44
      %s47 = sshll.u32 [#allocation9], 4
      %s48 = int_to_ptr.vmem [resolvable:$true] %s47
      %50 = dma.hbm_to_vmem [thread:$0]  %s2, 128, %s48, [#allocation8]
    $region13: #{tpu_custom_call.1} parent=1 // pred_fallthru
      _
    // Predicated region
    $region14: #{tpu_custom_call.1} parent=1 // pred_check
      _
    $region15: #{tpu_custom_call.1} parent=1 // pred_check_branch
      %52 = sbr.rel (0) target = $region17
    $region16: #{tpu_custom_call.1} parent=1 // pred_region
      _
    $region17: #{tpu_custom_call.1} parent=1 // pred_fallthru
      _
    // Predicated region
    $region18: #{tpu_custom_call.1} parent=1 // pred_check
      _
    $region19: #{tpu_custom_call.1} parent=1 // pred_check_branch
      %54 = sbr.rel (0) target = $region21
    $region20: #{tpu_custom_call.1} parent=1 // pred_region
      %s56 = ssub.s32 128, 128
      %57 = vsyncadd [#allocation11], %s56
      %s59 = sshll.u32 [#allocation10], 4
      %s60 = int_to_ptr.vmem [resolvable:$true] %s59
      %62 = dma.hbm_to_vmem [thread:$0]  %s4, 128, %s60, [#allocation11]
    $region21: #{tpu_custom_call.1} parent=1 // pred_fallthru
      _
    // Predicated region
    $region22: #{tpu_custom_call.1} parent=1 // pred_check
      _
    $region23: #{tpu_custom_call.1} parent=1 // pred_check_branch
      %64 = sbr.rel (0) target = $region25
    $region24: #{tpu_custom_call.1} parent=1 // pred_region
      %65 = dma.done [#allocation5], 768
    $region25: #{tpu_custom_call.1} parent=1 // pred_fallthru
      _
    // Predicated region
    $region26: #{tpu_custom_call.1} parent=1 // pred_check
      _
    $region27: #{tpu_custom_call.1} parent=1 // pred_check_branch
      %67 = sbr.rel (0) target = $region29
    $region28: #{tpu_custom_call.1} parent=1 // pred_region
      %68 = dma.done [#allocation8], 1024
    $region29: #{tpu_custom_call.1} parent=1 // pred_fallthru
      _
    // Predicated region
    $region30: #{tpu_custom_call.1} parent=1 // pred_check
      _
    $region31: #{tpu_custom_call.1} parent=1 // pred_check_branch
      %70 = sbr.rel (0) target = $region33
    $region32: #{tpu_custom_call.1} parent=1 // pred_region
      %71 = dma.done [#allocation8], 128
    $region33: #{tpu_custom_call.1} parent=1 // pred_fallthru
      _
    // Predicated region
    $region34: #{tpu_custom_call.1} parent=1 // pred_check
      _
    $region35: #{tpu_custom_call.1} parent=1 // pred_check_branch
      %73 = sbr.rel (0) target = $region37
    $region36: #{tpu_custom_call.1} parent=1 // pred_region
      %74 = dma.done [#allocation11], 128
    $region37: #{tpu_custom_call.1} parent=1 // pred_fallthru
      _
    %p76 = scmp.eq.s32.totalorder 0, 0
    // Predicated region
    $region38: #{tpu_custom_call.1} parent=1 // pred_check
      %p77 = pneg %p76
    $region39: #{tpu_custom_call.1} parent=1 // pred_check_branch
      %79 = sbr.rel (%p77) target = $region41
    $region40: #{tpu_custom_call.1} parent=1 // pred_region
      %v80 = vld [vmem:[%s3] sm:$0xff]
      %81 = vst [vmem:[#allocation2] sm:$0xff] %v80
      %v82 = vld [vmem:[#allocation10] sm:$0xff]
      %83 = vst [vmem:[#allocation3] sm:$0xff] %v82
    $region41: #{tpu_custom_call.1} parent=1 // pred_fallthru
      _
    %v84 = vld [vmem:[#allocation9] sm:$0x1]
    %v85 = vlaneseq
    %v86 = vshrl.u32 %v85, 7
    %v87 = vsub.s32 0, %v86
    %v88 = vrot.slane %v84, %v87
    %v89 = vld [vmem:[#allocation9 + $0x1] sm:$0x1]
    %v90 = vld [vmem:[#allocation9 + $0x2] sm:$0x1]
    %v91 = vlaneseq
    %v92 = vshrl.u32 %v91, 7
    %v93 = vsub.s32 0, %v92
    %v94 = vrot.slane %v90, %v93
    %v95 = vld [vmem:[#allocation9 + $0x3] sm:$0x1]
    %v96 = vlaneseq
    %v97 = vshrl.u32 %v96, 7
    %v98 = vsub.s32 0, %v97
    %v99 = vrot.slane %v95, %v98
    %v100 = vld [vmem:[#allocation4] sm:$0xf]
    %v101 = vld [vmem:[#allocation4 + $0x4] sm:$0xf]
    %v102 = vld [vmem:[#allocation4 + $0x8] sm:$0xf]
    %v103 = vld [vmem:[#allocation4 + $0xc] sm:$0xf]
    %v104 = vld [vmem:[#allocation4 + $0x10] sm:$0xf]
    %v105 = vld [vmem:[#allocation4 + $0x14] sm:$0xf]
    %v106 = vld [vmem:[#allocation4 + $0x18] sm:$0xf]
    %v107 = vld [vmem:[#allocation4 + $0x1c] sm:$0xf]
    %v108 = vld [vmem:[#allocation4 + $0x20] sm:$0xf]
    %v109 = vld [vmem:[#allocation4 + $0x24] sm:$0xf]
    %v110 = vld [vmem:[#allocation4 + $0x28] sm:$0xf]
    %v111 = vld [vmem:[#allocation4 + $0x2c] sm:$0xf]
    %v112 = vld [vmem:[#allocation7] sm:$0xf]
    %v113 = vld [vmem:[#allocation7 + $0x4] sm:$0xf]
    %v114 = vld [vmem:[#allocation7 + $0x8] sm:$0xf]
    %v115 = vld [vmem:[#allocation7 + $0xc] sm:$0xf]
    %v116 = vld [vmem:[#allocation7 + $0x10] sm:$0xf]
    %v117 = vld [vmem:[#allocation7 + $0x14] sm:$0xf]
    %v118 = vld [vmem:[#allocation7 + $0x18] sm:$0xf]
    %v119 = vld [vmem:[#allocation7 + $0x1c] sm:$0xf]
    %v120 = vld [vmem:[#allocation7 + $0x20] sm:$0xf]
    %v121 = vld [vmem:[#allocation7 + $0x24] sm:$0xf]
    %v122 = vld [vmem:[#allocation7 + $0x28] sm:$0xf]
    %v123 = vld [vmem:[#allocation7 + $0x2c] sm:$0xf]
    %v124 = vld [vmem:[#allocation7 + $0x30] sm:$0xf]
    %v125 = vld [vmem:[#allocation7 + $0x34] sm:$0xf]
    %v126 = vld [vmem:[#allocation7 + $0x38] sm:$0xf]
    %v127 = vld [vmem:[#allocation7 + $0x3c] sm:$0xf]
    %v128 = vlaneseq
    %v129 = vshrl.u32 %v128, 7
    %v130 = vsub.s32 0, %v129
    %v131 = vrot.slane %v89, %v130
    %v144 = vunpack.c.l.b16 %v100
    %v145 = vunpack.c.l.b16 %v101
    %v146 = vunpack.c.l.b16 %v102
    %v147 = vunpack.c.l.b16 %v103
    %v148 = vunpack.c.l.b16 %v104
    %v149 = vunpack.c.l.b16 %v105
    %v150 = vunpack.c.l.b16 %v106
    %v151 = vunpack.c.l.b16 %v107
    %v152 = vunpack.c.l.b16 %v108
    %v153 = vunpack.c.l.b16 %v109
    %v154 = vunpack.c.l.b16 %v110
    %v155 = vunpack.c.l.b16 %v111
    %v156 = vpack.c.b16 %v145, %v144
    %v157 = vpack.c.b16 %v147, %v146
    %v158 = vpack.c.b16 %v149, %v148
    %v159 = vpack.c.b16 %v151, %v150
    %v160 = vpack.c.b16 %v153, %v152
    %v161 = vpack.c.b16 %v155, %v154
    %v184 = vunpack.c.l.b16 %v112
    %v185 = vunpack.c.l.b16 %v113
    %v186 = vunpack.c.l.b16 %v114
    %v187 = vunpack.c.l.b16 %v115
    %v188 = vunpack.c.l.b16 %v116
    %v189 = vunpack.c.l.b16 %v117
    %v190 = vunpack.c.l.b16 %v118
    %v191 = vunpack.c.l.b16 %v119
    %v192 = vunpack.c.l.b16 %v120
    %v193 = vunpack.c.l.b16 %v121
    %v194 = vunpack.c.l.b16 %v122
    %v195 = vunpack.c.l.b16 %v123
    %v196 = vunpack.c.l.b16 %v124
    %v197 = vunpack.c.l.b16 %v125
    %v198 = vunpack.c.l.b16 %v126
    %v199 = vunpack.c.l.b16 %v127
    %v200 = vpack.c.b16 %v185, %v184
    %v201 = vpack.c.b16 %v187, %v186
    %v202 = vpack.c.b16 %v189, %v188
    %v203 = vpack.c.b16 %v191, %v190
    %v204 = vpack.c.b16 %v193, %v192
    %v205 = vpack.c.b16 %v195, %v194
    %v206 = vpack.c.b16 %v197, %v196
    %v207 = vpack.c.b16 %v199, %v198
    %216 = vmatprep.subr.bf16.mxu0 0
    %217 = vmatpush1.bf16.msra.mxu0 %v200
    %218 = vmatprep.subr.bf16.mxu0 0
    %219 = vmatpush1.bf16.msra.mxu0 %v201
    %220 = vmatprep.subr.bf16.mxu0 0
    %221 = vmatpush1.bf16.msra.mxu0 %v202
    %222 = vmatprep.subr.bf16.mxu0 0
    %223 = vmatpush1.bf16.msra.mxu0 %v203
    %224 = vmatprep.subr.bf16.mxu0 0
    %225 = vmatpush1.bf16.msra.mxu0 %v204
    %226 = vmatprep.subr.bf16.mxu0 0
    %227 = vmatpush1.bf16.msra.mxu0 %v205
    %228 = vmatprep.subr.bf16.mxu0 0
    %229 = vmatpush1.bf16.msra.mxu0 %v206
    %230 = vmatprep.subr.bf16.mxu0 0
    %231 = vmatpush1.bf16.msra.mxu0 %v207
    %232 = vmatprep.subr.bf16.mxu0 0
    %233 = vmatpush1.bf16.msra.mxu0 0
    %234 = vmatprep.subr.bf16.mxu0 0
    %235 = vmatpush1.bf16.msra.mxu0 0
    %236 = vmatprep.subr.bf16.mxu0 0
    %237 = vmatpush1.bf16.msra.mxu0 0
    %238 = vmatprep.subr.bf16.mxu0 0
    %239 = vmatpush1.bf16.msra.mxu0 0
    %240 = vmatprep.subr.bf16.mxu0 0
    %241 = vmatpush1.bf16.msra.mxu0 0
    %242 = vmatprep.subr.bf16.mxu0 0
    %243 = vmatpush1.bf16.msra.mxu0 0
    %244 = vmatprep.subr.bf16.mxu0 0
    %245 = vmatpush1.bf16.msra.mxu0 0
    %246 = vmatprep.subr.bf16.mxu0 0
    %247 = vmatpush1.bf16.msra.mxu0 0
    %248 = vmatprep.mubr.bf16.mxu0 0
    %249 = vmatmul.mubr.bf16.gmra.mrb[0].mxu0 %v156
    %v250 = vpop.f32.mrb[0].mxu0
    %v251 = vadd.f32 %v131, %v250
    %v252 = vpop.f32.mrb[0].mxu0
    %v253 = vpop.f32.mrb[0].mxu0
    %v254 = vadd.f32 %v131, %v253
    %v255 = vpop.f32.mrb[0].mxu0
    %256 = vmatprep.mubr.bf16.mxu0 0
    %257 = vmatmul.mubr.bf16.gmra.mrb[0].mxu0 %v157
    %v258 = vpop.f32.mrb[0].mxu0
    %v259 = vadd.f32 %v131, %v258
    %v260 = vpop.f32.mrb[0].mxu0
    %v261 = vpop.f32.mrb[0].mxu0
    %v262 = vadd.f32 %v131, %v261
    %v263 = vpop.f32.mrb[0].mxu0
    %264 = vmatprep.mubr.bf16.mxu0 0
    %265 = vmatmul.mubr.bf16.gmra.mrb[0].mxu0 %v158
    %v266 = vpop.f32.mrb[0].mxu0
    %v267 = vadd.f32 %v131, %v266
    %v268 = vpop.f32.mrb[0].mxu0
    %v269 = vpop.f32.mrb[0].mxu0
    %v270 = vadd.f32 %v131, %v269
    %v271 = vpop.f32.mrb[0].mxu0
    %272 = vmatprep.mubr.bf16.mxu0 0
    %273 = vmatmul.mubr.bf16.gmra.mrb[0].mxu0 %v159
    %v274 = vpop.f32.mrb[0].mxu0
    %v275 = vadd.f32 %v131, %v274
    %v276 = vpop.f32.mrb[0].mxu0
    %v277 = vpop.f32.mrb[0].mxu0
    %v278 = vadd.f32 %v131, %v277
    %v279 = vpop.f32.mrb[0].mxu0
    %280 = vmatprep.mubr.bf16.mxu0 0
    %281 = vmatmul.mubr.bf16.gmra.mrb[0].mxu0 %v160
    %v282 = vpop.f32.mrb[0].mxu0
    %v283 = vadd.f32 %v131, %v282
    %v284 = vpop.f32.mrb[0].mxu0
    %v285 = vpop.f32.mrb[0].mxu0
    %v286 = vadd.f32 %v131, %v285
    %v287 = vpop.f32.mrb[0].mxu0
    %288 = vmatprep.mubr.bf16.mxu0 0
    %289 = vmatmul.mubr.bf16.gmra.mrb[0].mxu0 %v161
    %v290 = vpop.f32.mrb[0].mxu0
    %v291 = vadd.f32 %v131, %v290
    %v292 = vpop.f32.mrb[0].mxu0
    %v293 = vpop.f32.mrb[0].mxu0
    %v294 = vadd.f32 %v131, %v293
    %v295 = vpop.f32.mrb[0].mxu0
    %296 = vdwg.mxu0
    %v297 = vld [vmem:[#allocation2] sm:$0xff]
    %v298 = vld [vmem:[#allocation3] sm:$0xff]
    %v299 = vmul.f32 %v297, %v88
    %v300 = vadd.f32 %v299, %v251
    %v301 = vmul.f32 %v99, %v298
    %v302 = vsub.f32 %v300, %v301
    %v303 = vsub.f32 %v302, %v94
    %vm304 = vcmp.gt.f32.partialorder %v303, 0.0
    %v305 = vsel %vm304, 1, 0
    %v306 = vcvt.s32.f32 %v305
    %307 = vst [vmem:[#allocation12] sm:$0xff] %v302
    %v308 = vpack.c.bf16 %v306, %v306
    %309 = vst [vmem:[#allocation13] sm:$0xf] %v308
    %v310 = vmul.f32 %v302, %v88
    %v311 = vadd.f32 %v310, %v254
    %v312 = vmul.f32 %v99, %v306
    %v313 = vsub.f32 %v311, %v312
    %v314 = vsub.f32 %v313, %v94
    %vm315 = vcmp.gt.f32.partialorder %v314, 0.0
    %v316 = vsel %vm315, 1, 0
    %v317 = vcvt.s32.f32 %v316
    %318 = vst [vmem:[#allocation12 + $0x8] sm:$0xff] %v313
    %v319 = vpack.c.bf16 %v317, %v317
    %320 = vst [vmem:[#allocation13 + $0x4] sm:$0xf] %v319
    %v321 = vmul.f32 %v313, %v88
    %v322 = vadd.f32 %v321, %v259
    %v323 = vmul.f32 %v99, %v317
    %v324 = vsub.f32 %v322, %v323
    %v325 = vsub.f32 %v324, %v94
    %vm326 = vcmp.gt.f32.partialorder %v325, 0.0
    %v327 = vsel %vm326, 1, 0
    %v328 = vcvt.s32.f32 %v327
    %329 = vst [vmem:[#allocation12 + $0x10] sm:$0xff] %v324
    %v330 = vpack.c.bf16 %v328, %v328
    %331 = vst [vmem:[#allocation13 + $0x8] sm:$0xf] %v330
    %v332 = vmul.f32 %v324, %v88
    %v333 = vadd.f32 %v332, %v262
    %v334 = vmul.f32 %v99, %v328
    %v335 = vsub.f32 %v333, %v334
    %v336 = vsub.f32 %v335, %v94
    %vm337 = vcmp.gt.f32.partialorder %v336, 0.0
    %v338 = vsel %vm337, 1, 0
    %v339 = vcvt.s32.f32 %v338
    %340 = vst [vmem:[#allocation12 + $0x18] sm:$0xff] %v335
    %v341 = vpack.c.bf16 %v339, %v339
    %342 = vst [vmem:[#allocation13 + $0xc] sm:$0xf] %v341
    %v343 = vmul.f32 %v335, %v88
    %v344 = vadd.f32 %v343, %v267
    %v345 = vmul.f32 %v99, %v339
    %v346 = vsub.f32 %v344, %v345
    %v347 = vsub.f32 %v346, %v94
    %vm348 = vcmp.gt.f32.partialorder %v347, 0.0
    %v349 = vsel %vm348, 1, 0
    %v350 = vcvt.s32.f32 %v349
    %351 = vst [vmem:[#allocation12 + $0x20] sm:$0xff] %v346
    %v352 = vpack.c.bf16 %v350, %v350
    %353 = vst [vmem:[#allocation13 + $0x10] sm:$0xf] %v352
    %v354 = vmul.f32 %v346, %v88
    %v355 = vadd.f32 %v354, %v270
    %v356 = vmul.f32 %v99, %v350
    %v357 = vsub.f32 %v355, %v356
    %v358 = vsub.f32 %v357, %v94
    %vm359 = vcmp.gt.f32.partialorder %v358, 0.0
    %v360 = vsel %vm359, 1, 0
    %v361 = vcvt.s32.f32 %v360
    %362 = vst [vmem:[#allocation12 + $0x28] sm:$0xff] %v357
    %v363 = vpack.c.bf16 %v361, %v361
    %364 = vst [vmem:[#allocation13 + $0x14] sm:$0xf] %v363
    %v365 = vmul.f32 %v357, %v88
    %v366 = vadd.f32 %v365, %v275
    %v367 = vmul.f32 %v99, %v361
    %v368 = vsub.f32 %v366, %v367
    %v369 = vsub.f32 %v368, %v94
    %vm370 = vcmp.gt.f32.partialorder %v369, 0.0
    %v371 = vsel %vm370, 1, 0
    %v372 = vcvt.s32.f32 %v371
    %373 = vst [vmem:[#allocation12 + $0x30] sm:$0xff] %v368
    %v374 = vpack.c.bf16 %v372, %v372
    %375 = vst [vmem:[#allocation13 + $0x18] sm:$0xf] %v374
    %v376 = vmul.f32 %v368, %v88
    %v377 = vadd.f32 %v376, %v278
    %v378 = vmul.f32 %v99, %v372
    %v379 = vsub.f32 %v377, %v378
    %v380 = vsub.f32 %v379, %v94
    %vm381 = vcmp.gt.f32.partialorder %v380, 0.0
    %v382 = vsel %vm381, 1, 0
    %v383 = vcvt.s32.f32 %v382
    %384 = vst [vmem:[#allocation12 + $0x38] sm:$0xff] %v379
    %v385 = vpack.c.bf16 %v383, %v383
    %386 = vst [vmem:[#allocation13 + $0x1c] sm:$0xf] %v385
    %v387 = vmul.f32 %v379, %v88
    %v388 = vadd.f32 %v387, %v283
    %v389 = vmul.f32 %v99, %v383
    %v390 = vsub.f32 %v388, %v389
    %v391 = vsub.f32 %v390, %v94
    %vm392 = vcmp.gt.f32.partialorder %v391, 0.0
    %v393 = vsel %vm392, 1, 0
    %v394 = vcvt.s32.f32 %v393
    %395 = vst [vmem:[#allocation12 + $0x40] sm:$0xff] %v390
    %v396 = vpack.c.bf16 %v394, %v394
    %397 = vst [vmem:[#allocation13 + $0x20] sm:$0xf] %v396
    %v398 = vmul.f32 %v390, %v88
    %v399 = vadd.f32 %v398, %v286
    %v400 = vmul.f32 %v99, %v394
    %v401 = vsub.f32 %v399, %v400
    %v402 = vsub.f32 %v401, %v94
    %vm403 = vcmp.gt.f32.partialorder %v402, 0.0
    %v404 = vsel %vm403, 1, 0
    %v405 = vcvt.s32.f32 %v404
    %406 = vst [vmem:[#allocation12 + $0x48] sm:$0xff] %v401
    %v407 = vpack.c.bf16 %v405, %v405
    %408 = vst [vmem:[#allocation13 + $0x24] sm:$0xf] %v407
    %v409 = vmul.f32 %v401, %v88
    %v410 = vadd.f32 %v409, %v291
    %v411 = vmul.f32 %v99, %v405
    %v412 = vsub.f32 %v410, %v411
    %v413 = vsub.f32 %v412, %v94
    %vm414 = vcmp.gt.f32.partialorder %v413, 0.0
    %v415 = vsel %vm414, 1, 0
    %v416 = vcvt.s32.f32 %v415
    %417 = vst [vmem:[#allocation12 + $0x50] sm:$0xff] %v412
    %v418 = vpack.c.bf16 %v416, %v416
    %419 = vst [vmem:[#allocation13 + $0x28] sm:$0xf] %v418
    %v420 = vmul.f32 %v412, %v88
    %v421 = vadd.f32 %v420, %v294
    %v422 = vmul.f32 %v99, %v416
    %v423 = vsub.f32 %v421, %v422
    %v424 = vsub.f32 %v423, %v94
    %vm425 = vcmp.gt.f32.partialorder %v424, 0.0
    %v426 = vsel %vm425, 1, 0
    %v427 = vcvt.s32.f32 %v426
    %428 = vst [vmem:[#allocation12 + $0x58] sm:$0xff] %v423
    %v429 = vpack.c.bf16 %v427, %v427
    %430 = vst [vmem:[#allocation13 + $0x2c] sm:$0xf] %v429
    %431 = vst [vmem:[#allocation2] sm:$0xff] %v423
    %432 = vst [vmem:[#allocation3] sm:$0xff] %v427
    // Predicated region
    $region42: #{tpu_custom_call.1} parent=1 // pred_check
      _
    $region43: #{tpu_custom_call.1} parent=1 // pred_check_branch
      %434 = sbr.rel (0) target = $region45
    $region44: #{tpu_custom_call.1} parent=1 // pred_region
      %s436 = ssub.s32 1536, 1536
      %437 = vsyncadd [#allocation6], %s436
      %s438 = sshll.u32 [#allocation12], 4
      %s439 = int_to_ptr.vmem [resolvable:$true] %s438
      %444 = dma.vmem_to_hbm [thread:$0]  %s439, 1536, %s5, [#allocation6], 128, 128, 8
    $region45: #{tpu_custom_call.1} parent=1 // pred_fallthru
      _
    // Predicated region
    $region46: #{tpu_custom_call.1} parent=1 // pred_check
      _
    $region47: #{tpu_custom_call.1} parent=1 // pred_check_branch
      %446 = sbr.rel (0) target = $region49
    $region48: #{tpu_custom_call.1} parent=1 // pred_region
      %s448 = ssub.s32 768, 768
      %449 = vsyncadd [#allocation14], %s448
      %s450 = sshll.u32 [#allocation13], 4
      %s451 = int_to_ptr.vmem [resolvable:$true] %s450
      %456 = dma.vmem_to_hbm [thread:$0]  %s451, 768, %s6, [#allocation14], 64, 64, 4
    $region49: #{tpu_custom_call.1} parent=1 // pred_fallthru
      _
    // Predicated region
    $region50: #{tpu_custom_call.1} parent=1 // pred_check
      _
    $region51: #{tpu_custom_call.1} parent=1 // pred_check_branch
      %458 = sbr.rel (0) target = $region53
    $region52: #{tpu_custom_call.1} parent=1 // pred_region
      %459 = dma.done [#allocation6], 1536
    $region53: #{tpu_custom_call.1} parent=1 // pred_fallthru
      _
    // Predicated region
    $region54: #{tpu_custom_call.1} parent=1 // pred_check
      _
    $region55: #{tpu_custom_call.1} parent=1 // pred_check_branch
      %461 = sbr.rel (0) target = $region57
    $region56: #{tpu_custom_call.1} parent=1 // pred_region
      %462 = dma.done [#allocation14], 768
    $region57: #{tpu_custom_call.1} parent=1 // pred_fallthru
      _
    %463 = vsyncpa [#allocation5], 1
    %464 = vsyncpa [#allocation8], 1
    %465 = vsyncpa [#allocation11], 1
    %466 = vsyncpa [#allocation6], 1
    %467 = vsyncpa [#allocation14], 1

</llo_original>
